<compile_context>
chip_gen: v7x
topology: tpu7x:2x2x1
jax: 0.10.0
libtpu: 0.0.40
codegen_flags: <defaults>
</compile_context>

<pallas_src>
import functools

import jax
import jax.numpy as jnp
from jax import lax
from jax.experimental import pallas as pl
from jax.experimental.pallas import tpu as pltpu


# --------------------------------------------------------------------------
# Small helpers
# --------------------------------------------------------------------------
def _round_up(x, m):
    return (x + m - 1) // m * m


def _sublane(dtype):
    return max(8, 32 // jnp.dtype(dtype).itemsize)


def _vmem_capacity_bytes():
    try:
        return int(pltpu.get_tpu_info().vmem_capacity_bytes)
    except Exception:
        return 64 << 20            # conservative (v7x per-TC)


def _vmem_limit(per_step_in_bytes, per_step_out_bytes, acc_bytes=0):
    # double-buffered inputs + outputs, resident accumulator, compiler headroom;
    # clamped to this chip's physical VMEM.
    need = 2 * per_step_in_bytes + 2 * per_step_out_bytes + acc_bytes + (4 << 20)
    return int(min(_vmem_capacity_bytes(), max(need, 16 << 20)))


def _is_cheap_exponent(alpha):
    p = float(alpha) - 1.0
    return p == 0.0 or p == 1.0 or (p > 0.0 and float(p).is_integer() and p <= 8.0)


def _effective_weight(w, alpha):
    """w * |w|^(alpha - 1), specialized on alpha at trace time."""
    p = float(alpha) - 1.0
    if p == 0.0:                       # alpha == 1: plain linear
        return w
    a = jnp.abs(w)
    if p == 1.0:                       # alpha == 2 (common case): w * |w|
        return w * a
    if p > 0.0 and float(p).is_integer() and p <= 8.0:
        mag = a                        # repeated multiplies on the VALU
        for _ in range(int(p) - 1):
            mag = mag * a
        return w * mag
    # Generic exponent: exp/log on the EUP.  Guard w == 0 so 0 * inf (p < 0)
    # and zero padding never produce NaN.
    mag = jnp.power(a, p)
    mag = jnp.where(w == 0, jnp.zeros_like(mag), mag)
    return w * mag


# --------------------------------------------------------------------------
# Kernels
# --------------------------------------------------------------------------
def _reparam_kernel(alpha, w_ref, o_ref):
    w = w_ref[...].astype(jnp.float32)
    o_ref[...] = _effective_weight(w, alpha).astype(o_ref.dtype)


def _reparam_kernel_masked(alpha, w_ref, m_ref, o_ref):
    w = w_ref[...].astype(jnp.float32)
    w_eff = _effective_weight(w, alpha) * m_ref[...].astype(jnp.float32)
    o_ref[...] = w_eff.astype(o_ref.dtype)


def _matmul_body(alpha, mxu_dtype, x_ref, w_ref, b_ref, m_ref, o_ref, acc_ref):
    k = pl.program_id(2)

    @pl.when(k == 0)
    def _init():
        acc_ref[...] = jnp.zeros_like(acc_ref)

    w = w_ref[...]
    if float(alpha) != 1.0:
        # Reparam computed in f32 (cheap VALU filler under the MXU/DMA slots),
        # even when the weight is streamed over HBM as bf16.
        w_eff = _effective_weight(w.astype(jnp.float32), alpha)
    else:
        w_eff = w
    if m_ref is not None:
        w_eff = w_eff * m_ref[...].astype(w_eff.dtype)

    dot_dtype = mxu_dtype if mxu_dtype is not None else x_ref.dtype
    x = x_ref[...]
    if x.dtype != dot_dtype:
        x = x.astype(dot_dtype)
    if w_eff.dtype != dot_dtype:
        w_eff = w_eff.astype(dot_dtype)

    # x: (tm, tk), w_eff: (tn, tk) -> contract dim 1 of both (no explicit .T).
    acc_ref[...] += lax.dot_general(
        x, w_eff,
        dimension_numbers=(((1,), (1,)), ((), ())),
        preferred_element_type=jnp.float32)

    @pl.when(k == pl.num_programs(2) - 1)
    def _finalize():
        o_ref[...] = (acc_ref[...] + b_ref[...].astype(jnp.float32)).astype(
            o_ref.dtype)


def _matmul_kernel(alpha, mxu_dtype, x_ref, w_ref, b_ref, o_ref, acc_ref):
    _matmul_body(alpha, mxu_dtype, x_ref, w_ref, b_ref, None, o_ref, acc_ref)


def _matmul_kernel_masked(alpha, mxu_dtype, x_ref, w_ref, b_ref, m_ref, o_ref,
                          acc_ref):
    _matmul_body(alpha, mxu_dtype, x_ref, w_ref, b_ref, m_ref, o_ref, acc_ref)


# --------------------------------------------------------------------------
# Pre-pass (generic-exponent path only)
# --------------------------------------------------------------------------
def _reparam_call(wp, maskp, alpha, tn, tk, out_dtype):
    """Elementwise pass: w_eff = w * |w|^(alpha-1) [* mask], f32 math."""
    Np, Kp = wp.shape
    grid = (Np // tn, Kp // tk)
    spec = pl.BlockSpec((tn, tk), lambda i, j: (i, j))
    in_bytes = tn * tk * wp.dtype.itemsize
    if maskp is None:
        kernel = functools.partial(_reparam_kernel, alpha)
        in_specs, args = [spec], (wp,)
    else:
        kernel = functools.partial(_reparam_kernel_masked, alpha)
        in_specs, args = [spec, spec], (wp, maskp)
        in_bytes += tn * tk * maskp.dtype.itemsize
    out_bytes = tn * tk * jnp.dtype(out_dtype).itemsize
    return pl.pallas_call(
        kernel,
        out_shape=jax.ShapeDtypeStruct((Np, Kp), out_dtype),
        grid_spec=pltpu.PrefetchScalarGridSpec(
            num_scalar_prefetch=0, grid=grid,
            in_specs=in_specs, out_specs=spec),
        compiler_params=pltpu.CompilerParams(
            dimension_semantics=("parallel", "parallel"),
            vmem_limit_bytes=_vmem_limit(in_bytes, out_bytes)),
    )(*args)


# --------------------------------------------------------------------------
# Main wrapper
# --------------------------------------------------------------------------
def powerprop_linear(x, w, b, alpha, mask=None, *, block_sizes=None,
                     mxu_dtype=jnp.bfloat16):
    """Pallas implementation of PowerPropLinear.forward.

    x: (..., in_features), w: (out_features, in_features), b: (out_features,)
    mask: optional (out_features, in_features)
    mxu_dtype: dtype fed to the MXU (accumulation is always f32).  bf16 is the
      native MXU dtype on v5e/v6e/v7x; pass None for a bit-faithful f32 path.
    Returns: (..., out_features)
    """
    orig_lead = x.shape[:-1]
    if x.ndim != 2:
        x = x.reshape(-1, x.shape[-1])
    B, IN = x.shape
    OUT, IN2 = w.shape
    assert IN == IN2, "x / w in_features mismatch"
    alpha = float(alpha)
    out_dtype = x.dtype
    if mxu_dtype is not None and jnp.dtype(mxu_dtype) == jnp.dtype(x.dtype):
        mxu_dtype = None                      # nothing to narrow
    x_feed_dtype = mxu_dtype if mxu_dtype is not None else x.dtype
    w_store_dtype = mxu_dtype if mxu_dtype is not None else w.dtype

    # --- tile selection (lane-dense, shrunk for small problems) -----------
    if block_sizes is None:
        tm_d, tn_d, tk_d = 512, 512, 1024     # fits 64 MiB VMEM (v7x) easily
    else:
        tm_d, tn_d, tk_d = block_sizes
    sub = _sublane(x_feed_dtype)
    tm = min(tm_d, _round_up(B, sub))
    if block_sizes is None and tm <= 64:
        # GEMV-ish regime: perf is pure weight-bytes/s -> bigger weight tiles.
        tn_d = max(tn_d, 512)
        tk_d = max(tk_d, 2048)
    tn = min(tn_d, _round_up(OUT, 128))
    tk = min(tk_d, _round_up(IN, 128))

    Mp = _round_up(B, tm)
    # v7x megacore: if the batch collapses to one m tile, keep >= 2 n tiles
    # so both TensorCores get work on the 'parallel' axes.
    out_p128 = _round_up(OUT, 128)
    if block_sizes is None and Mp // tm == 1 and out_p128 >= 256 and tn >= out_p128:
        tn = _round_up(-(-out_p128 // 2), 128)
    Np, Kp = _round_up(OUT, tn), _round_up(IN, tk)
    m_tiles, n_tiles, k_tiles = Mp // tm, Np // tn, Kp // tk

    # --- pad / cast operands (zeros contribute nothing) --------------------
    x_feed = x.astype(x_feed_dtype) if x.dtype != x_feed_dtype else x
    xp = (jnp.pad(x_feed, ((0, Mp - B), (0, Kp - IN)))
          if (Mp, Kp) != (B, IN) else x_feed)
    bp = b if Np == OUT else jnp.pad(b, (0, Np - OUT))
    b2 = bp.reshape(1, Np)

    maskp = None
    if mask is not None:
        # int8 stream for bool/int masks (4x less HBM traffic); bf16 for float
        # masks under the narrow MXU feed; untouched on the f32 path.
        if mask.dtype == jnp.bool_ or jnp.issubdtype(mask.dtype, jnp.integer):
            mask_dt = jnp.int8
        elif mxu_dtype is not None:
            mask_dt = mxu_dtype
        else:
            mask_dt = w.dtype
        maskp = mask.astype(mask_dt)
        if (Np, Kp) != (OUT, IN):
            maskp = jnp.pad(maskp, ((0, Np - OUT), (0, Kp - IN)))

    # --- reparam strategy ---------------------------------------------------
    fuse_reparam = _is_cheap_exponent(alpha)
    if fuse_reparam:
        # alpha in {1, 2, small ints}: fuse into the matmul (free VALU filler),
        # stream w narrow straight from HBM.  alpha == 1 / no mask never pays
        # an extra HBM round trip.
        w_feed = w.astype(w_store_dtype) if w.dtype != w_store_dtype else w
        wp = (jnp.pad(w_feed, ((0, Np - OUT), (0, Kp - IN)))
              if (Np, Kp) != (OUT, IN) else w_feed)
        alpha_mm, mask_mm = alpha, maskp
    else:
        # Generic |w|^(alpha-1) (EUP exp/log): single f32 pre-pass over W,
        # mask folded, emitted in the MXU streaming dtype.
        wp = (jnp.pad(w, ((0, Np - OUT), (0, Kp - IN)))
              if (Np, Kp) != (OUT, IN) else w)
        wp = _reparam_call(wp, maskp, alpha, tn, tk, w_store_dtype)
        alpha_mm, mask_mm = 1.0, None

    # --- tiled matmul with f32 accumulator ---------------------------------
    x_spec = pl.BlockSpec((tm, tk), lambda i, j, k: (i, k))
    w_spec = pl.BlockSpec((tn, tk), lambda i, j, k: (j, k))
    b_spec = pl.BlockSpec((1, tn), lambda i, j, k: (0, j))
    out_spec = pl.BlockSpec((tm, tn), lambda i, j, k: (i, j))

    in_specs = [x_spec, w_spec, b_spec]
    args = [xp, wp, b2]
    m_item = 0
    if mask_mm is not None:
        in_specs.append(pl.BlockSpec((tn, tk), lambda i, j, k: (j, k)))
        args.append(mask_mm)
        m_item = mask_mm.dtype.itemsize
        kernel = functools.partial(_matmul_kernel_masked, alpha_mm, mxu_dtype)
    else:
        kernel = functools.partial(_matmul_kernel, alpha_mm, mxu_dtype)

    per_step_in = (tm * tk * xp.dtype.itemsize
                   + tn * tk * (wp.dtype.itemsize + m_item)
                   + tn * b2.dtype.itemsize)
    vmem_limit = _vmem_limit(per_step_in,
                             tm * tn * jnp.dtype(out_dtype).itemsize,
                             acc_bytes=tm * tn * 4)

    out = pl.pallas_call(
        kernel,
        out_shape=jax.ShapeDtypeStruct((Mp, Np), out_dtype),
        grid_spec=pltpu.PrefetchScalarGridSpec(
            num_scalar_prefetch=0,
            grid=(m_tiles, n_tiles, k_tiles),
            in_specs=in_specs,
            out_specs=out_spec,
            scratch_shapes=[pltpu.VMEM((tm, tn), jnp.float32)]),
        compiler_params=pltpu.CompilerParams(
            dimension_semantics=("parallel", "parallel", "arbitrary"),
            vmem_limit_bytes=vmem_limit),
    )(*args)

    if (Mp, Np) != (B, OUT):
        out = out[:B, :OUT]
    return out.reshape(orig_lead + (OUT,))


# --------------------------------------------------------------------------
# Demo / correctness check
# --------------------------------------------------------------------------
def _reference(x, w, b, alpha, mask=None):
    w_eff = w * jnp.power(jnp.abs(w), alpha - 1.0)
    if mask is not None:
        w_eff = w_eff * mask.astype(w_eff.dtype)
    return x @ w_eff.T + b[None, :]


if __name__ == "__main__":
    key = jax.random.PRNGKey(0)

    # --- Test 1: module-sized small case, alpha = 2 ------------------------
    alpha = 2.0
    batch, in_features, out_features = 8, 32, 16
    kx, kw, kb, km = jax.random.split(key, 4)
    w = jax.random.uniform(kw, (out_features, in_features), dtype=jnp.float32)
    b = jax.random.uniform(kb, (out_features,), dtype=jnp.float32)
    x = jax.random.normal(kx, (batch, in_features), dtype=jnp.float32)
    mask = jax.random.uniform(km, (out_features, in_features)) > 0.5   # bool

    ref = _reference(x, w, b, alpha)

    # bit-faithful f32 path
    out_f32 = jax.block_until_ready(powerprop_linear(x, w, b, alpha,
                                                     mxu_dtype=None))
    assert out_f32.shape == (batch, out_features)
    assert jnp.allclose(out_f32, ref, atol=1e-4, rtol=1e-4), "mismatch (f32)"

    # default bf16 MXU feed (f32 accumulation) — looser tolerance
    out_bf = jax.block_until_ready(powerprop_linear(x, w, b, alpha))
    assert jnp.allclose(out_bf, ref, atol=1e-1, rtol=5e-2), "mismatch (bf16)"

    # masked path (int8 mask stream, fused reparam)
    ref_m = _reference(x, w, b, alpha, mask=mask)
    out_m = jax.block_until_ready(powerprop_linear(x, w, b, alpha, mask=mask))
    assert jnp.allclose(out_m, ref_m, atol=1e-1, rtol=5e-2), "mismatch (mask)"

    # --- Test 2: generic (non-integer) exponent -> two-pass reparam --------
    alpha_g = 2.5
    ref_g = _reference(x, w, b, alpha_g)
    out_g = jax.block_until_ready(powerprop_linear(x, w, b, alpha_g,
                                                   mxu_dtype=None))
    assert jnp.allclose(out_g, ref_g, atol=1e-4, rtol=1e-4), "mismatch (generic)"

    # --- Test 3: forced multi-tile grid (k accumulation + writeback) -------
    batch2, in2, out2 = 16, 256, 128
    k0, k1, k2 = jax.random.split(key, 3)
    w2 = jax.random.uniform(k0, (out2, in2), dtype=jnp.float32)
    b2 = jax.random.uniform(k1, (out2,), dtype=jnp.float32)
    x2 = jax.random.normal(k2, (batch2, in2), dtype=jnp.float32)
    out2_res = jax.block_until_ready(
        powerprop_linear(x2, w2, b2, alpha, block_sizes=(8, 128, 128),
                         mxu_dtype=None))
    assert out2_res.shape == (batch2, out2)
    assert jnp.allclose(out2_res, _reference(x2, w2, b2, alpha),
                        atol=1e-3, rtol=1e-3), "mismatch (tiled)"

    print("KERNEL_OK")
</pallas_src>

<mosaic_0001>
module attributes {stable_mosaic.version = 11 : i64} {
  func.func @_matmul_kernel(%arg0: i32, %arg1: i32, %arg2: i32, %arg3: memref<8x128xf32, #tpu.memory_space<vmem>>, %arg4: memref<128x128xf32, #tpu.memory_space<vmem>>, %arg5: memref<1x128xf32, #tpu.memory_space<vmem>>, %arg6: memref<8x128xf32, #tpu.memory_space<vmem>>, %arg7: memref<8x128xf32, #tpu.memory_space<vmem>>) attributes {dimension_semantics = [#tpu.dimension_semantics<parallel>, #tpu.dimension_semantics<parallel>, #tpu.dimension_semantics<arbitrary>], iteration_bounds = array<i64: 1, 1, 1>, scalar_prefetch = 0 : i64, scratch_operands = 1 : i64, tpu.core_type = #tpu.core_type<tc>, window_params = [{transform_indices = @transform_0, window_bounds = array<i64: 8, 128>}, {transform_indices = @transform_1, window_bounds = array<i64: 128, 128>}, {transform_indices = @transform_2, window_bounds = array<i64: 1, 128>}, {transform_indices = @transform_3, window_bounds = array<i64: 8, 128>}]} {
    %c0_i32 = arith.constant 0 : i32
    %0 = arith.cmpi eq, %arg2, %c0_i32 : i32
    %1 = arith.extui %0 : i1 to i32
    %c0_i32_0 = arith.constant 0 : i32
    %2 = arith.cmpi ne, %1, %c0_i32_0 : i32
    scf.if %2 {
      %cst_10 = arith.constant 0.000000e+00 : f32
      %14 = vector.broadcast %cst_10 : f32 to vector<8x128xf32>
      %c0_11 = arith.constant 0 : index
      %c0_12 = arith.constant 0 : index
      %15 = vector.load %arg7[%c0_11, %c0_12] : memref<8x128xf32, #tpu.memory_space<vmem>>, vector<8x128xf32>
      tpu.vector_store %arg7[%c0_11, %c0_12], %14 {strides = array<i32>} : memref<8x128xf32, #tpu.memory_space<vmem>>, vector<8x128xf32>,
    } else {
    }
    %c0 = arith.constant 0 : index
    %c0_1 = arith.constant 0 : index
    %3 = vector.load %arg4[%c0, %c0_1] : memref<128x128xf32, #tpu.memory_space<vmem>>, vector<128x128xf32>
    %4 = math.absf %3 : vector<128x128xf32>
    %5 = arith.mulf %3, %4 : vector<128x128xf32>
    %c0_2 = arith.constant 0 : index
    %c0_3 = arith.constant 0 : index
    %6 = vector.load %arg3[%c0_2, %c0_3] : memref<8x128xf32, #tpu.memory_space<vmem>>, vector<8x128xf32>
    %c0_4 = arith.constant 0 : index
    %c0_5 = arith.constant 0 : index
    %7 = vector.load %arg7[%c0_4, %c0_5] : memref<8x128xf32, #tpu.memory_space<vmem>>, vector<8x128xf32>
    %cst = arith.constant dense<0.000000e+00> : vector<8x128xf32>
    %8 = tpu.matmul %6, %5, %cst {dimension_numbers = #tpu.dot_dimension_numbers<[1], [1], [0], [0], [0, 0, 1, 0], [], []>} : vector<8x128xf32>, vector<128x128xf32>, vector<8x128xf32> -> vector<8x128xf32>
    %9 = arith.addf %7, %8 : vector<8x128xf32>
    %c0_6 = arith.constant 0 : index
    %c0_7 = arith.constant 0 : index
    %10 = vector.load %arg7[%c0_6, %c0_7] : memref<8x128xf32, #tpu.memory_space<vmem>>, vector<8x128xf32>
    tpu.vector_store %arg7[%c0_6, %c0_7], %9 {strides = array<i32>} : memref<8x128xf32, #tpu.memory_space<vmem>>, vector<8x128xf32>,
    %c0_i32_8 = arith.constant 0 : i32
    %11 = arith.cmpi eq, %arg2, %c0_i32_8 : i32
    %12 = arith.extui %11 : i1 to i32
    %c0_i32_9 = arith.constant 0 : i32
    %13 = arith.cmpi ne, %12, %c0_i32_9 : i32
    scf.if %13 {
      %c0_10 = arith.constant 0 : index
      %c0_11 = arith.constant 0 : index
      %14 = vector.load %arg7[%c0_10, %c0_11] : memref<8x128xf32, #tpu.memory_space<vmem>>, vector<8x128xf32>
      %c0_12 = arith.constant 0 : index
      %c0_13 = arith.constant 0 : index
      %15 = vector.load %arg5[%c0_12, %c0_13] : memref<1x128xf32, #tpu.memory_space<vmem>>, vector<1x128xf32>
      %16 = vector.broadcast %15 : vector<1x128xf32> to vector<8x128xf32>
      %17 = arith.addf %14, %16 : vector<8x128xf32>
      %c0_14 = arith.constant 0 : index
      %c0_15 = arith.constant 0 : index
      %18 = vector.load %arg6[%c0_14, %c0_15] : memref<8x128xf32, #tpu.memory_space<vmem>>, vector<8x128xf32>
      tpu.vector_store %arg6[%c0_14, %c0_15], %17 {strides = array<i32>} : memref<8x128xf32, #tpu.memory_space<vmem>>, vector<8x128xf32>,
    } else {
    }
    return
  }
  func.func @transform_0(%arg0: i32, %arg1: i32, %arg2: i32) -> (i32, i32) {
    %c0_i32 = arith.constant 0 : i32
    return %arg0, %arg2 : i32, i32
  }
  func.func @transform_1(%arg0: i32, %arg1: i32, %arg2: i32) -> (i32, i32) {
    %c0_i32 = arith.constant 0 : i32
    return %arg1, %arg2 : i32, i32
  }
  func.func @transform_2(%arg0: i32, %arg1: i32, %arg2: i32) -> (i32, i32) {
    %c0_i32 = arith.constant 0 : i32
    %c0_i32_0 = arith.constant 0 : i32
    return %c0_i32, %arg1 : i32, i32
  }
  func.func @transform_3(%arg0: i32, %arg1: i32, %arg2: i32) -> (i32, i32) {
    %c0_i32 = arith.constant 0 : i32
    return %arg0, %arg1 : i32, i32
  }
}

</mosaic_0001>

<llo_original>
// kernel: tpu_custom_call.1
$region0: #{tpu_custom_call.1}
  #allocation0 [shape = 'u32[]', space=smem, size = 0x4, offset = 0x4, fixed_abs, tag = 'smem constant byte address 0x4 - core index']
  #allocation1 [shape = 'u32[144,128]{1,0:T(1,128)}', space=vmem, size = 0x12000, scoped, tag = 'internal scratch']
  #allocation2 [shape = 'f32[8,128]{1,0:T(8,128)}', space=vmem, size = 0x1000, scoped, tag = 'scratch operand']
  %s0 = inlined_call_operand.hbm [shape: f32[8,128], index: 0, kind: input, shape index: {}]
  %s1 = inlined_call_operand.hbm [shape: f32[128,128], index: 1, kind: input, shape index: {}]
  %s2 = inlined_call_operand.vmem [shape: f32[1,128], index: 2, kind: input, shape index: {}]
  %s3 = inlined_call_operand.hbm [shape: f32[8,128], index: 3, kind: output, shape index: {}]
  %s4 = sld [smem:[#allocation0]]
  $region38: #{tpu_custom_call.1} parent=0
    _
  %s6 = ssub.s32 1, %s4
  %s7 = scalar_select 0, %s6, %s4
  $region1: #{tpu_custom_call.1} parent=0
    #allocation3 [shape = 'u8[4096]{0}', space=vmem, size = 0x1000, scoped, tag = 'input window, operand 0, single buffered']
    #allocation4 [shape = 's32[1]{0}', space=sflag, size = 0x4, scoped, tag = 'scoped memory for tpu_custom_call.1']
    #allocation5 [shape = 's32[1]{0}', space=sflag, size = 0x4, scoped, tag = 'scoped memory for tpu_custom_call.1']
    #allocation6 [shape = 'u8[65536]{0}', space=vmem, size = 0x10000, scoped, tag = 'input window, operand 1, single buffered']
    #allocation7 [shape = 's32[1]{0}', space=sflag, size = 0x4, scoped, tag = 'scoped memory for tpu_custom_call.1']
    #allocation8 [shape = 'u8[4096]{0}', space=vmem, size = 0x1000, scoped, tag = 'output window, operand 0, single buffered']
    %8 = vsyncpa [#allocation4], 0
    %9 = vsyncpa [#allocation7], 0
    %10 = vsyncpa [#allocation5], 0
    // Predicated region
    $region2: #{tpu_custom_call.1} parent=1 // pred_check
      _
    $region3: #{tpu_custom_call.1} parent=1 // pred_check_branch
      %12 = sbr.rel (0) target = $region5
    $region4: #{tpu_custom_call.1} parent=1 // pred_region
      %s14 = ssub.s32 128, 128
      %15 = vsyncadd [#allocation4], %s14
      %s17 = sshll.u32 [#allocation3], 4
      %s18 = int_to_ptr.vmem [resolvable:$true] %s17
      %20 = dma.hbm_to_vmem [thread:$0]  %s0, 128, %s18, [#allocation4]
    $region5: #{tpu_custom_call.1} parent=1 // pred_fallthru
      _
    // Predicated region
    $region6: #{tpu_custom_call.1} parent=1 // pred_check
      _
    $region7: #{tpu_custom_call.1} parent=1 // pred_check_branch
      %22 = sbr.rel (0) target = $region9
    $region8: #{tpu_custom_call.1} parent=1 // pred_region
      %s24 = ssub.s32 2048, 2048
      %25 = vsyncadd [#allocation7], %s24
      %s26 = sshll.u32 [#allocation6], 4
      %s27 = int_to_ptr.vmem [resolvable:$true] %s26
      %32 = dma.hbm_to_vmem [thread:$0]  %s1, 2048, %s27, [#allocation7], 128, 128, 8
    $region9: #{tpu_custom_call.1} parent=1 // pred_fallthru
      _
    // Predicated region
    $region10: #{tpu_custom_call.1} parent=1 // pred_check
      _
    $region11: #{tpu_custom_call.1} parent=1 // pred_check_branch
      %34 = sbr.rel (0) target = $region13
    $region12: #{tpu_custom_call.1} parent=1 // pred_region
      _
    $region13: #{tpu_custom_call.1} parent=1 // pred_fallthru
      _
    // Predicated region
    $region14: #{tpu_custom_call.1} parent=1 // pred_check
      _
    $region15: #{tpu_custom_call.1} parent=1 // pred_check_branch
      %36 = sbr.rel (0) target = $region17
    $region16: #{tpu_custom_call.1} parent=1 // pred_region
      %37 = dma.done [#allocation4], 128
    $region17: #{tpu_custom_call.1} parent=1 // pred_fallthru
      _
    // Predicated region
    $region18: #{tpu_custom_call.1} parent=1 // pred_check
      _
    $region19: #{tpu_custom_call.1} parent=1 // pred_check_branch
      %39 = sbr.rel (0) target = $region21
    $region20: #{tpu_custom_call.1} parent=1 // pred_region
      %40 = dma.done [#allocation7], 2048
    $region21: #{tpu_custom_call.1} parent=1 // pred_fallthru
      _
    %p41 = scmp.eq.s32.totalorder 0, 0
    // Predicated region
    $region22: #{tpu_custom_call.1} parent=1 // pred_check
      %p42 = pneg %p41
    $region23: #{tpu_custom_call.1} parent=1 // pred_check_branch
      %44 = sbr.rel (%p42) target = $region25
    $region24: #{tpu_custom_call.1} parent=1 // pred_region
      %45 = vst [vmem:[#allocation2] sm:$0xff] 0.0
    $region25: #{tpu_custom_call.1} parent=1 // pred_fallthru
      _
    %v46 = vld [vmem:[#allocation6] sm:$0xff]
    %v47 = vld [vmem:[#allocation6 + $0x8] sm:$0xff]
    %v48 = vld [vmem:[#allocation6 + $0x10] sm:$0xff]
    %v49 = vld [vmem:[#allocation6 + $0x18] sm:$0xff]
    %v50 = vld [vmem:[#allocation6 + $0x20] sm:$0xff]
    %v51 = vld [vmem:[#allocation6 + $0x28] sm:$0xff]
    %v52 = vld [vmem:[#allocation6 + $0x30] sm:$0xff]
    %v53 = vld [vmem:[#allocation6 + $0x38] sm:$0xff]
    %v54 = vld [vmem:[#allocation6 + $0x40] sm:$0xff]
    %v55 = vld [vmem:[#allocation6 + $0x48] sm:$0xff]
    %v56 = vld [vmem:[#allocation6 + $0x50] sm:$0xff]
    %v57 = vld [vmem:[#allocation6 + $0x58] sm:$0xff]
    %v58 = vld [vmem:[#allocation6 + $0x60] sm:$0xff]
    %v59 = vld [vmem:[#allocation6 + $0x68] sm:$0xff]
    %v60 = vld [vmem:[#allocation6 + $0x70] sm:$0xff]
    %v61 = vld [vmem:[#allocation6 + $0x78] sm:$0xff]
    %v62 = vand.u32 2147483647, %v46
    %v63 = vand.u32 2147483647, %v47
    %v64 = vand.u32 2147483647, %v48
    %v65 = vand.u32 2147483647, %v49
    %v66 = vand.u32 2147483647, %v50
    %v67 = vand.u32 2147483647, %v51
    %v68 = vand.u32 2147483647, %v52
    %v69 = vand.u32 2147483647, %v53
    %v70 = vand.u32 2147483647, %v54
    %v71 = vand.u32 2147483647, %v55
    %v72 = vand.u32 2147483647, %v56
    %v73 = vand.u32 2147483647, %v57
    %v74 = vand.u32 2147483647, %v58
    %v75 = vand.u32 2147483647, %v59
    %v76 = vand.u32 2147483647, %v60
    %v77 = vand.u32 2147483647, %v61
    %v78 = vmul.f32 %v46, %v62
    %v79 = vmul.f32 %v47, %v63
    %v80 = vmul.f32 %v48, %v64
    %v81 = vmul.f32 %v49, %v65
    %v82 = vmul.f32 %v50, %v66
    %v83 = vmul.f32 %v51, %v67
    %v84 = vmul.f32 %v52, %v68
    %v85 = vmul.f32 %v53, %v69
    %v86 = vmul.f32 %v54, %v70
    %v87 = vmul.f32 %v55, %v71
    %v88 = vmul.f32 %v56, %v72
    %v89 = vmul.f32 %v57, %v73
    %v90 = vmul.f32 %v58, %v74
    %v91 = vmul.f32 %v59, %v75
    %v92 = vmul.f32 %v60, %v76
    %v93 = vmul.f32 %v61, %v77
    %v94 = vld [vmem:[#allocation3] sm:$0xff]
    %v95 = vld [vmem:[#allocation2] sm:$0xff]
    %96 = vmatprep.subr.mxu0 0.0
    %97 = vmatpush1.xpose.msra.mxu0 %v78
    %98 = vmatprep.subr.mxu0 0.0
    %99 = vmatpush1.xpose.msra.mxu0 %v79
    %100 = vmatprep.subr.mxu0 0.0
    %101 = vmatpush1.xpose.msra.mxu0 %v80
    %102 = vmatprep.subr.mxu0 0.0
    %103 = vmatpush1.xpose.msra.mxu0 %v81
    %104 = vmatprep.subr.mxu0 0.0
    %105 = vmatpush1.xpose.msra.mxu0 %v82
    %106 = vmatprep.subr.mxu0 0.0
    %107 = vmatpush1.xpose.msra.mxu0 %v83
    %108 = vmatprep.subr.mxu0 0.0
    %109 = vmatpush1.xpose.msra.mxu0 %v84
    %110 = vmatprep.subr.mxu0 0.0
    %111 = vmatpush1.xpose.msra.mxu0 %v85
    %112 = vmatprep.subr.mxu0 0.0
    %113 = vmatpush1.xpose.msra.mxu0 %v86
    %114 = vmatprep.subr.mxu0 0.0
    %115 = vmatpush1.xpose.msra.mxu0 %v87
    %116 = vmatprep.subr.mxu0 0.0
    %117 = vmatpush1.xpose.msra.mxu0 %v88
    %118 = vmatprep.subr.mxu0 0.0
    %119 = vmatpush1.xpose.msra.mxu0 %v89
    %120 = vmatprep.subr.mxu0 0.0
    %121 = vmatpush1.xpose.msra.mxu0 %v90
    %122 = vmatprep.subr.mxu0 0.0
    %123 = vmatpush1.xpose.msra.mxu0 %v91
    %124 = vmatprep.subr.mxu0 0.0
    %125 = vmatpush1.xpose.msra.mxu0 %v92
    %126 = vmatprep.subr.mxu0 0.0
    %127 = vmatpush1.xpose.msra.mxu0 %v93
    %128 = vmatprep.subr.mxu0 0.0
    %129 = vmatpush1.xpose.msra.mxu0 0.0
    %130 = vmatprep.subr.mxu0 0.0
    %131 = vmatpush1.xpose.msra.mxu0 0.0
    %132 = vmatprep.subr.mxu0 0.0
    %133 = vmatpush1.xpose.msra.mxu0 0.0
    %134 = vmatprep.subr.mxu0 0.0
    %135 = vmatpush1.xpose.msra.mxu0 0.0
    %136 = vmatprep.subr.mxu0 0.0
    %137 = vmatpush1.xpose.msra.mxu0 0.0
    %138 = vmatprep.subr.mxu0 0.0
    %139 = vmatpush1.xpose.msra.mxu0 0.0
    %140 = vmatprep.subr.mxu0 0.0
    %141 = vmatpush1.xpose.msra.mxu0 0.0
    %142 = vmatprep.subr.mxu0 0.0
    %143 = vmatpush1.xpose.msra.mxu0 0.0
    %144 = vmatprep.subr.mxu0 0.0
    %145 = vmatpush1.xpose.msra.mxu0 0.0
    %146 = vmatprep.subr.mxu0 0.0
    %147 = vmatpush1.xpose.msra.mxu0 0.0
    %148 = vmatprep.subr.mxu0 0.0
    %149 = vmatpush1.xpose.msra.mxu0 0.0
    %150 = vmatprep.subr.mxu0 0.0
    %151 = vmatpush1.xpose.msra.mxu0 0.0
    %152 = vmatprep.subr.mxu0 0.0
    %153 = vmatpush1.xpose.msra.mxu0 0.0
    %154 = vmatprep.subr.mxu0 0.0
    %155 = vmatpush1.xpose.msra.mxu0 0.0
    %156 = vmatprep.subr.mxu0 0.0
    %157 = vmatpush1.xpose.msra.mxu0 0.0
    %158 = vmatprep.subr.mxu0 0.0
    %159 = vmatpush1.xpose.msra.mxu0 0.0
    %160 = vmatprep.mubr.f32.mxu0 0.0
    %161 = vmatmul.mubr.f32.gmra.mrb[0].mxu0 %v94
    %v162 = vpop.f32.mrb[0].mxu0
    %v163 = vadd.f32 0.0, %v162
    %v164 = vpop.f32.mrb[0].mxu0
    %165 = vdwg.mxu0
    %v166 = vadd.f32 %v95, %v163
    %167 = vst [vmem:[#allocation2] sm:$0xff] %v166
    // Predicated region
    $region26: #{tpu_custom_call.1} parent=1 // pred_check
      %p168 = pneg %p41
    $region27: #{tpu_custom_call.1} parent=1 // pred_check_branch
      %170 = sbr.rel (%p168) target = $region29
    $region28: #{tpu_custom_call.1} parent=1 // pred_region
      %v171 = vld [vmem:[#allocation2] sm:$0xff]
      %v172 = vld [vmem:[%s2] sm:$0x1]
      %v174 = vlaneseq
      %v175 = vshrl.u32 %v174, 7
      %v176 = vsub.s32 0, %v175
      %v177 = vrot.slane %v172, %v176
      %v179 = vadd.f32 %v171, %v177
      %180 = vst [vmem:[#allocation8] sm:$0xff] %v179
    $region29: #{tpu_custom_call.1} parent=1 // pred_fallthru
      _
    // Predicated region
    $region30: #{tpu_custom_call.1} parent=1 // pred_check
      _
    $region31: #{tpu_custom_call.1} parent=1 // pred_check_branch
      %182 = sbr.rel (0) target = $region33
    $region32: #{tpu_custom_call.1} parent=1 // pred_region
      %s184 = ssub.s32 128, 128
      %185 = vsyncadd [#allocation5], %s184
      %s187 = sshll.u32 [#allocation8], 4
      %s188 = int_to_ptr.vmem [resolvable:$true] %s187
      %190 = dma.vmem_to_hbm [thread:$0]  %s188, 128, %s3, [#allocation5]
    $region33: #{tpu_custom_call.1} parent=1 // pred_fallthru
      _
    // Predicated region
    $region34: #{tpu_custom_call.1} parent=1 // pred_check
      _
    $region35: #{tpu_custom_call.1} parent=1 // pred_check_branch
      %192 = sbr.rel (0) target = $region37
    $region36: #{tpu_custom_call.1} parent=1 // pred_region
      %193 = dma.done [#allocation5], 128
    $region37: #{tpu_custom_call.1} parent=1 // pred_fallthru
      _
    %194 = vsyncpa [#allocation4], 1
    %195 = vsyncpa [#allocation7], 1
    %196 = vsyncpa [#allocation5], 1

</llo_original>
